<compile_context>
chip_gen: v7x
topology: tpu7x:2x2x1
jax: 0.10.0
libtpu: 0.0.40
codegen_flags: <defaults>
</compile_context>

<pallas_src>
import math

import jax
import jax.numpy as jnp
from jax.experimental import pallas as pl
from jax.experimental.pallas import tpu as pltpu


def _stats_kernel(x_ref, sum_ref, sq_ref):
    """Per-row partial sums for one (TM, HW) slab."""
    x = x_ref[...].astype(jnp.float32)                # (TM, HW), dense vregs
    sum_ref[0] = jnp.sum(x, axis=1, keepdims=True)    # (TM, 1) lane reduce (XLU)
    sq_ref[0] = jnp.sum(x * x, axis=1, keepdims=True)  # (TM, 1)


def _norm_kernel(x_ref, scale_ref, shift_ref, o_ref):
    """out = x * scale_row + shift_row (VPU elementwise, lane-dense store)."""
    x = x_ref[...]                                    # (TM, HW)
    o_ref[...] = (x * scale_ref[...] + shift_ref[...]).astype(o_ref.dtype)


def _choose_rows(M, C, HW, itemsize, target_bytes=2 << 20):
    """Rows per grid step: multiple of C (so every block starts on a channel
    boundary) and of 8 (sublane tiling), dividing M exactly, with the input
    block at most ~target_bytes."""
    max_rows = max(1, target_bytes // max(1, HW * itemsize))
    if M <= max_rows:
        return M                      # whole array in one (full-extent) block
    base = C * 8 // math.gcd(C, 8)
    tm = (max_rows // base) * base
    while tm >= base:
        if M % tm == 0:
            return tm
        tm -= base
    # TODO(synk): no aligned divisor found; fall back to a single full block
    # (may exceed the VMEM budget for very large, oddly-shaped inputs).
    return M


def my_batch_norm_3d(x, gamma=None, beta=None, *, eps=1e-5):
    """Pallas implementation of myBatchNorm3d.forward (training-mode BN3d)."""
    T, B, C, H, W = x.shape
    HW = H * W
    M = T * B * C
    if gamma is None:
        gamma = jnp.ones((C,), jnp.float32)
    if beta is None:
        beta = jnp.zeros((C,), jnp.float32)

    x2d = x.reshape(M, HW)            # contiguous reshape (free); row r -> c = r % C

    tm = _choose_rows(M, C, HW, x.dtype.itemsize)
    n_steps = M // tm
    cparams = pltpu.CompilerParams(
        dimension_semantics=("parallel",),
        vmem_limit_bytes=32 * 1024 * 1024,
    )

    # ---- pass 1: per-row partial sums / sums of squares --------------------
    sums, sqs = pl.pallas_call(
        _stats_kernel,
        out_shape=(
            jax.ShapeDtypeStruct((n_steps, tm, 1), jnp.float32),
            jax.ShapeDtypeStruct((n_steps, tm, 1), jnp.float32),
        ),
        grid=(n_steps,),
        in_specs=[pl.BlockSpec((tm, HW), lambda g: (g, 0))],
        out_specs=(
            pl.BlockSpec((1, tm, 1), lambda g: (g, 0, 0)),
            pl.BlockSpec((1, tm, 1), lambda g: (g, 0, 0)),
        ),
        compiler_params=cparams,
    )(x2d)

    # ---- tiny O(C) epilogue in plain JAX ------------------------------------
    per_row_sum = sums.sum(axis=0)[:, 0]                       # (tm,)
    per_row_sq = sqs.sum(axis=0)[:, 0]                         # (tm,)
    s_c = per_row_sum.reshape(tm // C, C).sum(axis=0)          # (C,)
    ss_c = per_row_sq.reshape(tm // C, C).sum(axis=0)          # (C,)
    count = jnp.float32(T * B * H * W)
    mean = s_c / count
    var = jnp.maximum(ss_c / count - mean * mean, 0.0)         # biased var (BN)
    inv_std = jax.lax.rsqrt(var + jnp.float32(eps))
    scale = gamma.astype(jnp.float32) * inv_std                # (C,)
    shift = beta.astype(jnp.float32) - mean * scale            # (C,)
    # Per-row (channel-repeated) vectors, built ONCE and kept VMEM-resident.
    scale_rows = jnp.tile(scale, tm // C).reshape(tm, 1)
    shift_rows = jnp.tile(shift, tm // C).reshape(tm, 1)

    # ---- pass 2: normalize ---------------------------------------------------
    out2d = pl.pallas_call(
        _norm_kernel,
        out_shape=jax.ShapeDtypeStruct((M, HW), x.dtype),
        grid=(n_steps,),
        in_specs=[
            pl.BlockSpec((tm, HW), lambda g: (g, 0)),
            pl.BlockSpec((tm, 1), lambda g: (0, 0)),
            pl.BlockSpec((tm, 1), lambda g: (0, 0)),
        ],
        out_specs=pl.BlockSpec((tm, HW), lambda g: (g, 0)),
        compiler_params=cparams,
    )(x2d, scale_rows, shift_rows)

    return out2d.reshape(T, B, C, H, W)


if __name__ == "__main__":
    key = jax.random.PRNGKey(0)
    # step=2 -> T=2; small (T, B, C, H, W) shapes consistent with the module.
    T, B, C, H, W = 2, 2, 4, 16, 16
    x = jax.random.normal(key, (T, B, C, H, W), dtype=jnp.float32)

    out = my_batch_norm_3d(x)
    out = jax.block_until_ready(out)
    assert out.shape == (T, B, C, H, W), out.shape

    # Pure-JAX reference of the PyTorch forward:
    #   permute -> BatchNorm3d (training stats, gamma=1, beta=0, eps=1e-5) -> permute.
    mean = x.mean(axis=(0, 1, 3, 4))
    var = x.var(axis=(0, 1, 3, 4))                 # biased variance, as BN uses
    ref = (x - mean[None, None, :, None, None]) * jax.lax.rsqrt(
        var + 1e-5)[None, None, :, None, None]
    assert jnp.allclose(out, ref, rtol=1e-4, atol=1e-4), float(
        jnp.max(jnp.abs(out - ref)))

    print("KERNEL_OK")
</pallas_src>

<mosaic_0001>
module attributes {stable_mosaic.version = 11 : i64} {
  func.func @_stats_kernel(%arg0: i32, %arg1: memref<16x256xf32, #tpu.memory_space<vmem>>, %arg2: memref<1x16x1xf32, #tpu.memory_space<vmem>>, %arg3: memref<1x16x1xf32, #tpu.memory_space<vmem>>) attributes {dimension_semantics = [#tpu.dimension_semantics<parallel>], iteration_bounds = array<i64: 1>, scalar_prefetch = 0 : i64, scratch_operands = 0 : i64, tpu.core_type = #tpu.core_type<tc>, window_params = [{transform_indices = @transform_0, window_bounds = array<i64: 16, 256>}, {transform_indices = @transform_1, window_bounds = array<i64: 1, 16, 1>}, {transform_indices = @transform_2, window_bounds = array<i64: 1, 16, 1>}]} {
    %c0 = arith.constant 0 : index
    %c0_0 = arith.constant 0 : index
    %0 = vector.load %arg1[%c0, %c0_0] : memref<16x256xf32, #tpu.memory_space<vmem>>, vector<16x256xf32>
    %cst = arith.constant dense<0.000000e+00> : vector<16xf32>
    %1 = vector.multi_reduction <add>, %0, %cst [1] : vector<16x256xf32> to vector<16xf32>
    %2 = vector.shape_cast %1 : vector<16xf32> to vector<16x1xf32>
    %c0_1 = arith.constant 0 : index
    %c0_2 = arith.constant 0 : index
    %c0_3 = arith.constant 0 : index
    %3 = vector.load %arg2[%c0_1, %c0_2, %c0_3] : memref<1x16x1xf32, #tpu.memory_space<vmem>>, vector<1x16x1xf32>
    %4 = vector.shape_cast %3 : vector<1x16x1xf32> to vector<16x1xf32>
    %5 = vector.shape_cast %2 : vector<16x1xf32> to vector<1x16x1xf32>
    tpu.vector_store %arg2[%c0_1, %c0_2, %c0_3], %5 {strides = array<i32>} : memref<1x16x1xf32, #tpu.memory_space<vmem>>, vector<1x16x1xf32>,
    %6 = arith.mulf %0, %0 : vector<16x256xf32>
    %cst_4 = arith.constant dense<0.000000e+00> : vector<16xf32>
    %7 = vector.multi_reduction <add>, %6, %cst_4 [1] : vector<16x256xf32> to vector<16xf32>
    %8 = vector.shape_cast %7 : vector<16xf32> to vector<16x1xf32>
    %c0_5 = arith.constant 0 : index
    %c0_6 = arith.constant 0 : index
    %c0_7 = arith.constant 0 : index
    %9 = vector.load %arg3[%c0_5, %c0_6, %c0_7] : memref<1x16x1xf32, #tpu.memory_space<vmem>>, vector<1x16x1xf32>
    %10 = vector.shape_cast %9 : vector<1x16x1xf32> to vector<16x1xf32>
    %11 = vector.shape_cast %8 : vector<16x1xf32> to vector<1x16x1xf32>
    tpu.vector_store %arg3[%c0_5, %c0_6, %c0_7], %11 {strides = array<i32>} : memref<1x16x1xf32, #tpu.memory_space<vmem>>, vector<1x16x1xf32>,
    return
  }
  func.func @transform_0(%arg0: i32) -> (i32, i32) {
    %c0_i32 = arith.constant 0 : i32
    %c0_i32_0 = arith.constant 0 : i32
    return %arg0, %c0_i32 : i32, i32
  }
  func.func @transform_1(%arg0: i32) -> (i32, i32, i32) {
    %c0_i32 = arith.constant 0 : i32
    %c0_i32_0 = arith.constant 0 : i32
    %c0_i32_1 = arith.constant 0 : i32
    return %arg0, %c0_i32, %c0_i32_0 : i32, i32, i32
  }
  func.func @transform_2(%arg0: i32) -> (i32, i32, i32) {
    %c0_i32 = arith.constant 0 : i32
    %c0_i32_0 = arith.constant 0 : i32
    %c0_i32_1 = arith.constant 0 : i32
    return %arg0, %c0_i32, %c0_i32_0 : i32, i32, i32
  }
}

</mosaic_0001>

<llo_original>
// kernel: tpu_custom_call.1
$region0: #{tpu_custom_call.1}
  #allocation0 [shape = 'u32[]', space=smem, size = 0x4, offset = 0x4, fixed_abs, tag = 'smem constant byte address 0x4 - core index']
  #allocation1 [shape = 'u32[144,128]{1,0:T(1,128)}', space=vmem, size = 0x12000, scoped, tag = 'internal scratch']
  %s0 = inlined_call_operand.hbm [shape: f32[16,256], index: 0, kind: input, shape index: {}]
  %s1 = inlined_call_operand.vmem [shape: f32[1,16,1], index: 1, kind: output, shape index: {0}]
  %s2 = inlined_call_operand.vmem [shape: f32[1,16,1], index: 2, kind: output, shape index: {1}]
  %3 = xla_tuple %s1, %s2
  %s4 = sld [smem:[#allocation0]]
  $region26: #{tpu_custom_call.1} parent=0
    _
  %s6 = ssub.s32 1, %s4
  %s7 = scalar_select 0, %s6, %s4
  $region1: #{tpu_custom_call.1} parent=0
    #allocation2 [shape = 'u8[16384]{0}', space=vmem, size = 0x4000, scoped, tag = 'input window, operand 0, single buffered']
    #allocation3 [shape = 's32[1]{0}', space=sflag, size = 0x4, scoped, tag = 'scoped memory for tpu_custom_call.1']
    %8 = vsyncpa [#allocation3], 0
    // Predicated region
    $region2: #{tpu_custom_call.1} parent=1 // pred_check
      _
    $region3: #{tpu_custom_call.1} parent=1 // pred_check_branch
      %10 = sbr.rel (0) target = $region5
    $region4: #{tpu_custom_call.1} parent=1 // pred_region
      %s12 = ssub.s32 512, 512
      %13 = vsyncadd [#allocation3], %s12
      %s14 = sshll.u32 [#allocation2], 4
      %s15 = int_to_ptr.vmem [resolvable:$true] %s14
      %20 = dma.hbm_to_vmem [thread:$0]  %s0, 512, %s15, [#allocation3], 256, 256, 16
    $region5: #{tpu_custom_call.1} parent=1 // pred_fallthru
      _
    // Predicated region
    $region6: #{tpu_custom_call.1} parent=1 // pred_check
      _
    $region7: #{tpu_custom_call.1} parent=1 // pred_check_branch
      %22 = sbr.rel (0) target = $region9
    $region8: #{tpu_custom_call.1} parent=1 // pred_region
      %23 = dma.done [#allocation3], 512
    $region9: #{tpu_custom_call.1} parent=1 // pred_fallthru
      _
    %v24 = vld [vmem:[#allocation2] sm:$0xff]
    %v25 = vld [vmem:[#allocation2 + $0x8] sm:$0xff]
    %v26 = vld [vmem:[#allocation2 + $0x10] sm:$0xff]
    %v27 = vld [vmem:[#allocation2 + $0x18] sm:$0xff]
    %v28 = vadd.f32 %v24, %v25
    %29 = vadd.xlane.f32.xlu0 %v28
    %v30 = vpop.xlane.xlu0 %29
    %v31 = vadd.f32 %v26, %v27
    %32 = vadd.xlane.f32.xlu0 %v31
    %v33 = vpop.xlane.xlu0 %32
    %vm34 = vcmask 7168
    %35 = vst.msk [vmem:[%s1] sm:$0xff] %vm34, %v30
    %36 = vst.msk [vmem:[%s1 + $0x8] sm:$0xff] %vm34, %v33
    %v37 = vmul.f32 %v24, %v24
    %v38 = vmul.f32 %v25, %v25
    %v39 = vmul.f32 %v26, %v26
    %v40 = vmul.f32 %v27, %v27
    %v41 = vadd.f32 %v37, %v38
    %42 = vadd.xlane.f32.xlu0 %v41
    %v43 = vpop.xlane.xlu0 %42
    %v44 = vadd.f32 %v39, %v40
    %45 = vadd.xlane.f32.xlu0 %v44
    %v46 = vpop.xlane.xlu0 %45
    %47 = vst.msk [vmem:[%s2] sm:$0xff] %vm34, %v43
    %48 = vst.msk [vmem:[%s2 + $0x8] sm:$0xff] %vm34, %v46
    // Predicated region
    $region10: #{tpu_custom_call.1} parent=1 // pred_check
      _
    $region11: #{tpu_custom_call.1} parent=1 // pred_check_branch
      %50 = sbr.rel (0) target = $region13
    $region12: #{tpu_custom_call.1} parent=1 // pred_region
      _
    $region13: #{tpu_custom_call.1} parent=1 // pred_fallthru
      _
    // Predicated region
    $region14: #{tpu_custom_call.1} parent=1 // pred_check
      _
    $region15: #{tpu_custom_call.1} parent=1 // pred_check_branch
      %52 = sbr.rel (0) target = $region17
    $region16: #{tpu_custom_call.1} parent=1 // pred_region
      _
    $region17: #{tpu_custom_call.1} parent=1 // pred_fallthru
      _
    // Predicated region
    $region18: #{tpu_custom_call.1} parent=1 // pred_check
      _
    $region19: #{tpu_custom_call.1} parent=1 // pred_check_branch
      %54 = sbr.rel (0) target = $region21
    $region20: #{tpu_custom_call.1} parent=1 // pred_region
      _
    $region21: #{tpu_custom_call.1} parent=1 // pred_fallthru
      _
    // Predicated region
    $region22: #{tpu_custom_call.1} parent=1 // pred_check
      _
    $region23: #{tpu_custom_call.1} parent=1 // pred_check_branch
      %56 = sbr.rel (0) target = $region25
    $region24: #{tpu_custom_call.1} parent=1 // pred_region
      _
    $region25: #{tpu_custom_call.1} parent=1 // pred_fallthru
      _
    %57 = vsyncpa [#allocation3], 1

</llo_original>
